<compile_context>
chip_gen: v6e
topology: v6e:2x2x1
jax: 0.10.0
libtpu: 0.0.40
codegen_flags: <defaults>
</compile_context>

<pallas_src>
import functools

import jax
import jax.numpy as jnp
from jax.experimental import pallas as pl
from jax.experimental.pallas import tpu as pltpu


def _round_up(x, m):
    return ((x + m - 1) // m) * m


# ---------------------------------------------------------------------------
# Kernel
# ---------------------------------------------------------------------------
def _actor_kernel(x_ref, w1_ref, b1_ref, w2_ref, b2_ref, w3_ref, b3_ref,
                  o_ref, *, max_action, nonlinearity):
    """One batch tile: three matmuls + activations, entirely in VMEM."""

    def act(h):  # h is f32
        if nonlinearity == "relu":
            return jnp.maximum(h, 0.0)
        elif nonlinearity == "elu":
            # expm1 avoids cancellation for small negative h; clamp avoids
            # overflow in the unselected branch of where().
            return jnp.where(h > 0.0, h, jnp.expm1(jnp.minimum(h, 0.0)))
        else:
            return jnp.tanh(h)

    w_dtype = w1_ref.dtype            # bf16 (default) or f32 weights
    x = x_ref[...].astype(w_dtype)

    # layer 1: (TB, Sp) @ (Sp, H1p) + (1, H1p)
    h = jnp.dot(x, w1_ref[...], preferred_element_type=jnp.float32)
    h = act(h + b1_ref[...].astype(jnp.float32))

    # layer 2: (TB, H1p) @ (H1p, H2p) + (1, H2p)
    h = jnp.dot(h.astype(w_dtype), w2_ref[...],
                preferred_element_type=jnp.float32)
    h = act(h + b2_ref[...].astype(jnp.float32))

    # layer 3: (TB, H2p) @ (H2p, Ap) + (1, Ap), tanh, scale
    h = jnp.dot(h.astype(w_dtype), w3_ref[...],
                preferred_element_type=jnp.float32)
    h = h + b3_ref[...].astype(jnp.float32)
    o_ref[...] = (max_action * jnp.tanh(h)).astype(o_ref.dtype)


# ---------------------------------------------------------------------------
# Param prep (lane padding of hidden/output dims, sublane padding of w1 rows)
# ---------------------------------------------------------------------------
def prepare_actor_params(params, *, lane=128, weight_dtype=jnp.bfloat16):
    """Zero-pad (in, out)-layout weights/biases.

    * Hidden/output feature dims -> multiples of 128 (lane-dense vregs and an
      unmasked output store).
    * w1's contraction (row) dim -> only sublane granularity (16 bf16 / 8 f32);
      padding it to 128 would force an 8x-inflated copy of the state in HBM
      for no MXU benefit.
    Padded weight rows/cols and bias entries are zero, so padded lanes stay
    exactly 0 through relu/elu/tanh and the sliced result is unchanged.
    """
    def pad2(a, rows, cols):
        out = jnp.zeros((rows, cols), weight_dtype)
        return out.at[:a.shape[0], :a.shape[1]].set(a.astype(weight_dtype))

    S, H1 = params["w1"].shape
    H2 = params["w2"].shape[1]
    A = params["w3"].shape[1]
    sub_k = 16 if weight_dtype == jnp.bfloat16 else 8
    Sp = _round_up(S, sub_k)
    H1p, H2p, Ap = (_round_up(d, lane) for d in (H1, H2, A))

    return {
        "w1": pad2(params["w1"], Sp, H1p), "b1": pad2(params["b1"], 1, H1p),
        "w2": pad2(params["w2"], H1p, H2p), "b2": pad2(params["b2"], 1, H2p),
        "w3": pad2(params["w3"], H2p, Ap), "b3": pad2(params["b3"], 1, Ap),
    }


# ---------------------------------------------------------------------------
# Wrapper
# ---------------------------------------------------------------------------
def actor_forward(state, padded_params, *, max_action, action_dim,
                  nonlinearity="relu", batch_tile=1024, out_dtype=None,
                  slice_output=True):
    """Run the Actor forward pass.

    state          : (B, state_dim) f32
    padded_params  : output of prepare_actor_params (padded, (in, out) layout)
    action_dim     : true (unpadded) action dimension for the final slice
    out_dtype      : kernel output dtype (default: weight dtype, i.e. bf16)
    slice_output   : if False, return the padded (B, 128) buffer so the
                     downstream consumer can fuse the column slice.
    """
    w1, b1 = padded_params["w1"], padded_params["b1"]
    w2, b2 = padded_params["w2"], padded_params["b2"]
    w3, b3 = padded_params["w3"], padded_params["b3"]

    B, S = state.shape
    Sp, H1p = w1.shape
    H2p = w2.shape[1]
    Ap = w3.shape[1]
    if out_dtype is None:
        out_dtype = w1.dtype

    # State: only pad columns if the contraction dim needed sublane rounding
    # (usually a no-op).  Never pad the batch dim -- partial edge blocks
    # handle the remainder and the extra rows are discarded.
    x = state.astype(jnp.float32)
    if Sp != S:
        x = jnp.zeros((B, Sp), jnp.float32).at[:, :S].set(x)

    # Batch tiling.  TB is a multiple of 16 (bf16 sublane granularity of the
    # output tile).  Small batches: one grid step.  Large batches: >=2 steps
    # so both v7x TensorCores get work on the "parallel" axis, capped at
    # batch_tile rows per step.
    if B <= 256:
        TB = _round_up(max(B, 16), 16)
    else:
        TB = min(batch_tile, _round_up((B + 1) // 2, 16))
    grid = (pl.cdiv(B, TB),)

    kernel = functools.partial(
        _actor_kernel, max_action=float(max_action),
        nonlinearity=nonlinearity)

    # Weights/biases: constant index_map -> VMEM-resident, DMA'd once.
    const = lambda i: (0, 0)
    in_specs = [
        pl.BlockSpec((TB, Sp), lambda i: (i, 0)),     # state tile
        pl.BlockSpec((Sp, H1p), const), pl.BlockSpec((1, H1p), const),
        pl.BlockSpec((H1p, H2p), const), pl.BlockSpec((1, H2p), const),
        pl.BlockSpec((H2p, Ap), const), pl.BlockSpec((1, Ap), const),
    ]
    out_specs = pl.BlockSpec((TB, Ap), lambda i: (i, 0))   # lane-dense output

    w_itemsize = jnp.dtype(w1.dtype).itemsize
    out_itemsize = jnp.dtype(out_dtype).itemsize
    bytes_accessed = (
        x.size * 4 + B * Ap * out_itemsize +
        (w1.size + w2.size + w3.size + b1.size + b2.size + b3.size) * w_itemsize)
    flops = 2 * B * (Sp * H1p + H1p * H2p + H2p * Ap)
    transcendentals = B * Ap                          # final tanh
    if nonlinearity != "relu":
        transcendentals += B * (H1p + H2p)            # elu/tanh hidden layers

    out = pl.pallas_call(
        kernel,
        out_shape=jax.ShapeDtypeStruct((B, Ap), out_dtype),
        grid=grid,
        in_specs=in_specs,
        out_specs=out_specs,
        compiler_params=pltpu.CompilerParams(
            dimension_semantics=("parallel",)),       # megacore on v7x
        cost_estimate=pl.CostEstimate(
            flops=flops, transcendentals=transcendentals,
            bytes_accessed=bytes_accessed),
    )(x, w1, b1, w2, b2, w3, b3)

    if not slice_output:
        return out          # (B, Ap) padded buffer for downstream fusion
    return out[:, :action_dim]


# ---------------------------------------------------------------------------
# Init + pure-JAX reference
# ---------------------------------------------------------------------------
def init_actor_params(key, state_dim, action_dim,
                      hidden1_node=400, hidden2_node=300):
    """nn.Linear-style init (U[-1/sqrt(fan_in), 1/sqrt(fan_in)]), (in, out) layout."""
    def linear(k, fan_in, fan_out):
        kw, kb = jax.random.split(k)
        bound = 1.0 / jnp.sqrt(fan_in)
        w = jax.random.uniform(kw, (fan_in, fan_out), jnp.float32, -bound, bound)
        b = jax.random.uniform(kb, (1, fan_out), jnp.float32, -bound, bound)
        return w, b

    k1, k2, k3 = jax.random.split(key, 3)
    w1, b1 = linear(k1, state_dim, hidden1_node)
    w2, b2 = linear(k2, hidden1_node, hidden2_node)
    w3, b3 = linear(k3, hidden2_node, action_dim)
    return {"w1": w1, "b1": b1, "w2": w2, "b2": b2, "w3": w3, "b3": b3}


def actor_forward_ref(state, params, *, max_action, nonlinearity="relu"):
    def act(h):
        if nonlinearity == "relu":
            return jnp.maximum(h, 0.0)
        elif nonlinearity == "elu":
            return jnp.where(h > 0.0, h, jnp.expm1(jnp.minimum(h, 0.0)))
        return jnp.tanh(h)

    h = act(state @ params["w1"] + params["b1"])
    h = act(h @ params["w2"] + params["b2"])
    return max_action * jnp.tanh(h @ params["w3"] + params["b3"])


# ---------------------------------------------------------------------------
if __name__ == "__main__":
    key = jax.random.PRNGKey(0)
    k_params, k_state, k_state_big = jax.random.split(key, 3)

    batch = 2
    state_dim = 16
    action_dim = 8
    max_action = 2.0

    raw_params = init_actor_params(k_params, state_dim, action_dim)
    params_bf16 = prepare_actor_params(raw_params)                       # bf16 (default)
    params_f32 = prepare_actor_params(raw_params, weight_dtype=jnp.float32)

    state = jax.random.normal(k_state, (batch, state_dim), jnp.float32)

    for nl in ("relu", "elu", "tanh"):
        ref = actor_forward_ref(state, raw_params, max_action=max_action,
                                nonlinearity=nl)

        # f32 weights: tight check against the reference.
        out32 = jax.block_until_ready(actor_forward(
            state, params_f32, max_action=max_action, action_dim=action_dim,
            nonlinearity=nl))
        assert out32.shape == (batch, action_dim)
        assert jnp.allclose(out32, ref, atol=1e-5, rtol=1e-5), ("f32", nl)

        # bf16 weights/output (default fast path): loose check.
        outbf = jax.block_until_ready(actor_forward(
            state, params_bf16, max_action=max_action, action_dim=action_dim,
            nonlinearity=nl))
        assert outbf.shape == (batch, action_dim)
        outbf32 = outbf.astype(jnp.float32)
        assert jnp.all(jnp.isfinite(outbf32)), ("finite", nl)
        assert jnp.allclose(outbf32, ref, atol=5e-2, rtol=5e-2), ("bf16", nl)

    # Larger batch: exercises the multi-step grid (>=2 "parallel" steps).
    big_B = 384
    state_big = jax.random.normal(k_state_big, (big_B, state_dim), jnp.float32)
    ref_big = actor_forward_ref(state_big, raw_params, max_action=max_action,
                                nonlinearity="relu")
    out_big = jax.block_until_ready(actor_forward(
        state_big, params_bf16, max_action=max_action, action_dim=action_dim,
        nonlinearity="relu"))
    assert out_big.shape == (big_B, action_dim)
    assert jnp.allclose(out_big.astype(jnp.float32), ref_big,
                        atol=5e-2, rtol=5e-2)

    print("KERNEL_OK")
</pallas_src>

<mosaic_0001>
module attributes {stable_mosaic.version = 11 : i64} {
  func.func @_actor_kernel(%arg0: i32, %arg1: memref<16x16xf32, #tpu.memory_space<vmem>>, %arg2: memref<16x512xf32, #tpu.memory_space<vmem>>, %arg3: memref<1x512xf32, #tpu.memory_space<vmem>>, %arg4: memref<512x384xf32, #tpu.memory_space<vmem>>, %arg5: memref<1x384xf32, #tpu.memory_space<vmem>>, %arg6: memref<384x128xf32, #tpu.memory_space<vmem>>, %arg7: memref<1x128xf32, #tpu.memory_space<vmem>>, %arg8: memref<16x128xf32, #tpu.memory_space<vmem>>) attributes {dimension_semantics = [#tpu.dimension_semantics<parallel>], iteration_bounds = array<i64: 1>, scalar_prefetch = 0 : i64, scratch_operands = 0 : i64, tpu.core_type = #tpu.core_type<tc>, window_params = [{transform_indices = @transform_0, window_bounds = array<i64: 16, 16>}, {pipeline_mode = #tpu.pipeline_mode<synchronous>, transform_indices = @transform_1, window_bounds = array<i64: 16, 512>}, {pipeline_mode = #tpu.pipeline_mode<synchronous>, transform_indices = @transform_2, window_bounds = array<i64: 1, 512>}, {pipeline_mode = #tpu.pipeline_mode<synchronous>, transform_indices = @transform_3, window_bounds = array<i64: 512, 384>}, {pipeline_mode = #tpu.pipeline_mode<synchronous>, transform_indices = @transform_4, window_bounds = array<i64: 1, 384>}, {pipeline_mode = #tpu.pipeline_mode<synchronous>, transform_indices = @transform_5, window_bounds = array<i64: 384, 128>}, {pipeline_mode = #tpu.pipeline_mode<synchronous>, transform_indices = @transform_6, window_bounds = array<i64: 1, 128>}, {transform_indices = @transform_7, window_bounds = array<i64: 16, 128>}]} {
    %c0 = arith.constant 0 : index
    %c0_0 = arith.constant 0 : index
    %0 = vector.load %arg1[%c0, %c0_0] : memref<16x16xf32, #tpu.memory_space<vmem>>, vector<16x16xf32>
    %c0_1 = arith.constant 0 : index
    %c0_2 = arith.constant 0 : index
    %1 = vector.load %arg2[%c0_1, %c0_2] : memref<16x512xf32, #tpu.memory_space<vmem>>, vector<16x512xf32>
    %cst = arith.constant dense<0.000000e+00> : vector<16x512xf32>
    %2 = tpu.matmul %0, %1, %cst {dimension_numbers = #tpu.dot_dimension_numbers<[1], [0], [0], [1], [0, 0, 1, 1], [], []>} : vector<16x16xf32>, vector<16x512xf32>, vector<16x512xf32> -> vector<16x512xf32>
    %c0_3 = arith.constant 0 : index
    %c0_4 = arith.constant 0 : index
    %3 = vector.load %arg3[%c0_3, %c0_4] : memref<1x512xf32, #tpu.memory_space<vmem>>, vector<1x512xf32>
    %4 = vector.broadcast %3 : vector<1x512xf32> to vector<16x512xf32>
    %5 = arith.addf %2, %4 : vector<16x512xf32>
    %cst_5 = arith.constant 0.000000e+00 : f32
    %6 = vector.broadcast %cst_5 : f32 to vector<16x512xf32>
    %7 = arith.maximumf %5, %6 : vector<16x512xf32>
    %c0_6 = arith.constant 0 : index
    %c0_7 = arith.constant 0 : index
    %8 = vector.load %arg4[%c0_6, %c0_7] : memref<512x384xf32, #tpu.memory_space<vmem>>, vector<512x384xf32>
    %cst_8 = arith.constant dense<0.000000e+00> : vector<16x384xf32>
    %9 = tpu.matmul %7, %8, %cst_8 {dimension_numbers = #tpu.dot_dimension_numbers<[1], [0], [0], [1], [0, 0, 1, 1], [], []>} : vector<16x512xf32>, vector<512x384xf32>, vector<16x384xf32> -> vector<16x384xf32>
    %c0_9 = arith.constant 0 : index
    %c0_10 = arith.constant 0 : index
    %10 = vector.load %arg5[%c0_9, %c0_10] : memref<1x384xf32, #tpu.memory_space<vmem>>, vector<1x384xf32>
    %11 = vector.broadcast %10 : vector<1x384xf32> to vector<16x384xf32>
    %12 = arith.addf %9, %11 : vector<16x384xf32>
    %cst_11 = arith.constant 0.000000e+00 : f32
    %13 = vector.broadcast %cst_11 : f32 to vector<16x384xf32>
    %14 = arith.maximumf %12, %13 : vector<16x384xf32>
    %c0_12 = arith.constant 0 : index
    %c0_13 = arith.constant 0 : index
    %15 = vector.load %arg6[%c0_12, %c0_13] : memref<384x128xf32, #tpu.memory_space<vmem>>, vector<384x128xf32>
    %cst_14 = arith.constant dense<0.000000e+00> : vector<16x128xf32>
    %16 = tpu.matmul %14, %15, %cst_14 {dimension_numbers = #tpu.dot_dimension_numbers<[1], [0], [0], [1], [0, 0, 1, 1], [], []>} : vector<16x384xf32>, vector<384x128xf32>, vector<16x128xf32> -> vector<16x128xf32>
    %c0_15 = arith.constant 0 : index
    %c0_16 = arith.constant 0 : index
    %17 = vector.load %arg7[%c0_15, %c0_16] : memref<1x128xf32, #tpu.memory_space<vmem>>, vector<1x128xf32>
    %18 = vector.broadcast %17 : vector<1x128xf32> to vector<16x128xf32>
    %19 = arith.addf %16, %18 : vector<16x128xf32>
    %20 = math.tanh %19 : vector<16x128xf32>
    %cst_17 = arith.constant 2.000000e+00 : f32
    %21 = vector.broadcast %cst_17 : f32 to vector<16x128xf32>
    %22 = arith.mulf %21, %20 : vector<16x128xf32>
    %c0_18 = arith.constant 0 : index
    %c0_19 = arith.constant 0 : index
    %23 = vector.load %arg8[%c0_18, %c0_19] : memref<16x128xf32, #tpu.memory_space<vmem>>, vector<16x128xf32>
    tpu.vector_store %arg8[%c0_18, %c0_19], %22 {strides = array<i32>} : memref<16x128xf32, #tpu.memory_space<vmem>>, vector<16x128xf32>,
    return
  }
  func.func @transform_0(%arg0: i32) -> (i32, i32) {
    %c0_i32 = arith.constant 0 : i32
    %c0_i32_0 = arith.constant 0 : i32
    return %arg0, %c0_i32 : i32, i32
  }
  func.func @transform_1(%arg0: i32) -> (i32, i32) {
    %c0_i32 = arith.constant 0 : i32
    %c0_i32_0 = arith.constant 0 : i32
    %c0_i32_1 = arith.constant 0 : i32
    return %c0_i32, %c0_i32_0 : i32, i32
  }
  func.func @transform_2(%arg0: i32) -> (i32, i32) {
    %c0_i32 = arith.constant 0 : i32
    %c0_i32_0 = arith.constant 0 : i32
    %c0_i32_1 = arith.constant 0 : i32
    return %c0_i32, %c0_i32_0 : i32, i32
  }
  func.func @transform_3(%arg0: i32) -> (i32, i32) {
    %c0_i32 = arith.constant 0 : i32
    %c0_i32_0 = arith.constant 0 : i32
    %c0_i32_1 = arith.constant 0 : i32
    return %c0_i32, %c0_i32_0 : i32, i32
  }
  func.func @transform_4(%arg0: i32) -> (i32, i32) {
    %c0_i32 = arith.constant 0 : i32
    %c0_i32_0 = arith.constant 0 : i32
    %c0_i32_1 = arith.constant 0 : i32
    return %c0_i32, %c0_i32_0 : i32, i32
  }
  func.func @transform_5(%arg0: i32) -> (i32, i32) {
    %c0_i32 = arith.constant 0 : i32
    %c0_i32_0 = arith.constant 0 : i32
    %c0_i32_1 = arith.constant 0 : i32
    return %c0_i32, %c0_i32_0 : i32, i32
  }
  func.func @transform_6(%arg0: i32) -> (i32, i32) {
    %c0_i32 = arith.constant 0 : i32
    %c0_i32_0 = arith.constant 0 : i32
    %c0_i32_1 = arith.constant 0 : i32
    return %c0_i32, %c0_i32_0 : i32, i32
  }
  func.func @transform_7(%arg0: i32) -> (i32, i32) {
    %c0_i32 = arith.constant 0 : i32
    %c0_i32_0 = arith.constant 0 : i32
    return %arg0, %c0_i32 : i32, i32
  }
}

</mosaic_0001>

<llo_original>
// kernel: tpu_custom_call.1
$region0: #{tpu_custom_call.1}
  #allocation0 [shape = 'u32[]', space=smem, size = 0x4, offset = 0x4, fixed_abs, tag = 'smem constant byte address 0x4 - core index']
  #allocation1 [shape = 'u32[144,128]{1,0:T(1,128)}', space=vmem, size = 0x12000, scoped, tag = 'internal scratch']
  %s0 = inlined_call_operand.hbm [shape: f32[2,16], index: 0, kind: input, shape index: {}]
  %s1 = inlined_call_operand.hbm [shape: f32[16,512], index: 1, kind: input, shape index: {}]
  %s2 = inlined_call_operand.hbm [shape: f32[1,512], index: 2, kind: input, shape index: {}]
  %s3 = inlined_call_operand.hbm [shape: f32[512,384], index: 3, kind: input, shape index: {}]
  %s4 = inlined_call_operand.vmem [shape: f32[1,384], index: 4, kind: input, shape index: {}]
  %s5 = inlined_call_operand.hbm [shape: f32[384,128], index: 5, kind: input, shape index: {}]
  %s6 = inlined_call_operand.vmem [shape: f32[1,128], index: 6, kind: input, shape index: {}]
  %s7 = inlined_call_operand.hbm [shape: f32[2,128], index: 7, kind: output, shape index: {}]
  %s8 = sld [smem:[#allocation0]]
  $region58: #{tpu_custom_call.1} parent=0
    _
  %s10 = ssub.s32 1, %s8
  %s11 = scalar_select 0, %s10, %s8
  $region1: #{tpu_custom_call.1} parent=0
    #allocation2 [shape = 'u8[8192]{0}', space=vmem, size = 0x2000, scoped, tag = 'input window, operand 0, single buffered']
    #allocation3 [shape = 's32[1]{0}', space=sflag, size = 0x4, scoped, tag = 'scoped memory for tpu_custom_call.1']
    #allocation4 [shape = 's32[1]{0}', space=sflag, size = 0x4, scoped, tag = 'scoped memory for tpu_custom_call.1']
    #allocation5 [shape = 'u8[32768]{0}', space=vmem, size = 0x8000, scoped, tag = 'input window, operand 1, single buffered']
    #allocation6 [shape = 's32[1]{0}', space=sflag, size = 0x4, scoped, tag = 'scoped memory for tpu_custom_call.1']
    #allocation7 [shape = 'u8[2048]{0}', space=vmem, size = 0x800, scoped, tag = 'input window, operand 2, single buffered']
    #allocation8 [shape = 'u8[786432]{0}', space=vmem, size = 0xc0000, scoped, tag = 'input window, operand 3, single buffered']
    #allocation9 [shape = 's32[1]{0}', space=sflag, size = 0x4, scoped, tag = 'scoped memory for tpu_custom_call.1']
    #allocation10 [shape = 'u8[196608]{0}', space=vmem, size = 0x30000, scoped, tag = 'input window, operand 5, single buffered']
    #allocation11 [shape = 'u8[8192]{0}', space=vmem, size = 0x2000, scoped, tag = 'output window, operand 0, single buffered']
    %12 = vsyncpa [#allocation3], 0
    %13 = vsyncpa [#allocation6], 0
    %14 = vsyncpa [#allocation9], 0
    %15 = vsyncpa [#allocation4], 0
    // Predicated region
    $region2: #{tpu_custom_call.1} parent=1 // pred_check
      _
    $region3: #{tpu_custom_call.1} parent=1 // pred_check_branch
      %17 = sbr.rel (0) target = $region5
    $region4: #{tpu_custom_call.1} parent=1 // pred_region
      %s19 = ssub.s32 256, 32
      %20 = vsyncadd [#allocation3], %s19
      %s21 = sshll.u32 [#allocation2], 4
      %s22 = int_to_ptr.vmem [resolvable:$true] %s21
      %27 = dma.hbm_to_vmem [thread:$0]  %s0, 32, %s22, [#allocation3], 32, 32, 2
    $region5: #{tpu_custom_call.1} parent=1 // pred_fallthru
      _
    // Predicated region
    $region6: #{tpu_custom_call.1} parent=1 // pred_check
      _
    $region7: #{tpu_custom_call.1} parent=1 // pred_check_branch
      %29 = sbr.rel (0) target = $region9
    $region8: #{tpu_custom_call.1} parent=1 // pred_region
      %s31 = ssub.s32 1024, 1024
      %32 = vsyncadd [#allocation6], %s31
      %s33 = sshll.u32 [#allocation5], 4
      %s34 = int_to_ptr.vmem [resolvable:$true] %s33
      %39 = dma.hbm_to_vmem [thread:$0]  %s1, 1024, %s34, [#allocation6], 512, 512, 32
    $region9: #{tpu_custom_call.1} parent=1 // pred_fallthru
      _
    // Predicated region
    $region10: #{tpu_custom_call.1} parent=1 // pred_check
      _
    $region11: #{tpu_custom_call.1} parent=1 // pred_check_branch
      %41 = sbr.rel (0) target = $region13
    $region12: #{tpu_custom_call.1} parent=1 // pred_region
      %s43 = ssub.s32 64, 64
      %44 = vsyncadd [#allocation6], %s43
      %s46 = sshll.u32 [#allocation7], 4
      %s47 = int_to_ptr.vmem [resolvable:$true] %s46
      %49 = dma.hbm_to_vmem [thread:$0]  %s2, 64, %s47, [#allocation6]
    $region13: #{tpu_custom_call.1} parent=1 // pred_fallthru
      _
    // Predicated region
    $region14: #{tpu_custom_call.1} parent=1 // pred_check
      _
    $region15: #{tpu_custom_call.1} parent=1 // pred_check_branch
      %51 = sbr.rel (0) target = $region17
    $region16: #{tpu_custom_call.1} parent=1 // pred_region
      %s53 = ssub.s32 24576, 24576
      %54 = vsyncadd [#allocation9], %s53
      %s55 = sshll.u32 [#allocation8], 4
      %s56 = int_to_ptr.vmem [resolvable:$true] %s55
      %61 = dma.hbm_to_vmem [thread:$0]  %s3, 24576, %s56, [#allocation9], 384, 384, 24
    $region17: #{tpu_custom_call.1} parent=1 // pred_fallthru
      _
    // Predicated region
    $region18: #{tpu_custom_call.1} parent=1 // pred_check
      _
    $region19: #{tpu_custom_call.1} parent=1 // pred_check_branch
      %63 = sbr.rel (0) target = $region21
    $region20: #{tpu_custom_call.1} parent=1 // pred_region
      _
    $region21: #{tpu_custom_call.1} parent=1 // pred_fallthru
      _
    // Predicated region
    $region22: #{tpu_custom_call.1} parent=1 // pred_check
      _
    $region23: #{tpu_custom_call.1} parent=1 // pred_check_branch
      %65 = sbr.rel (0) target = $region25
    $region24: #{tpu_custom_call.1} parent=1 // pred_region
      %s67 = ssub.s32 6144, 6144
      %68 = vsyncadd [#allocation9], %s67
      %s69 = sshll.u32 [#allocation10], 4
      %s70 = int_to_ptr.vmem [resolvable:$true] %s69
      %75 = dma.hbm_to_vmem [thread:$0]  %s5, 6144, %s70, [#allocation9], 128, 128, 8
    $region25: #{tpu_custom_call.1} parent=1 // pred_fallthru
      _
    // Predicated region
    $region26: #{tpu_custom_call.1} parent=1 // pred_check
      _
    $region27: #{tpu_custom_call.1} parent=1 // pred_check_branch
      %77 = sbr.rel (0) target = $region29
    $region28: #{tpu_custom_call.1} parent=1 // pred_region
      _
    $region29: #{tpu_custom_call.1} parent=1 // pred_fallthru
      _
    // Predicated region
    $region30: #{tpu_custom_call.1} parent=1 // pred_check
      _
    $region31: #{tpu_custom_call.1} parent=1 // pred_check_branch
      %79 = sbr.rel (0) target = $region33
    $region32: #{tpu_custom_call.1} parent=1 // pred_region
      %80 = dma.done [#allocation3], 256
    $region33: #{tpu_custom_call.1} parent=1 // pred_fallthru
      _
    // Predicated region
    $region34: #{tpu_custom_call.1} parent=1 // pred_check
      _
    $region35: #{tpu_custom_call.1} parent=1 // pred_check_branch
      %82 = sbr.rel (0) target = $region37
    $region36: #{tpu_custom_call.1} parent=1 // pred_region
      %83 = dma.done [#allocation6], 1024
    $region37: #{tpu_custom_call.1} parent=1 // pred_fallthru
      _
    // Predicated region
    $region38: #{tpu_custom_call.1} parent=1 // pred_check
      _
    $region39: #{tpu_custom_call.1} parent=1 // pred_check_branch
      %85 = sbr.rel (0) target = $region41
    $region40: #{tpu_custom_call.1} parent=1 // pred_region
      %86 = dma.done [#allocation6], 64
    $region41: #{tpu_custom_call.1} parent=1 // pred_fallthru
      _
    // Predicated region
    $region42: #{tpu_custom_call.1} parent=1 // pred_check
      _
    $region43: #{tpu_custom_call.1} parent=1 // pred_check_branch
      %88 = sbr.rel (0) target = $region45
    $region44: #{tpu_custom_call.1} parent=1 // pred_region
      %89 = dma.done [#allocation9], 24576
    $region45: #{tpu_custom_call.1} parent=1 // pred_fallthru
      _
    // Predicated region
    $region46: #{tpu_custom_call.1} parent=1 // pred_check
      _
    $region47: #{tpu_custom_call.1} parent=1 // pred_check_branch
      %91 = sbr.rel (0) target = $region49
    $region48: #{tpu_custom_call.1} parent=1 // pred_region
      %92 = dma.done [#allocation9], 6144
    $region49: #{tpu_custom_call.1} parent=1 // pred_fallthru
      _
    %v93 = vld [vmem:[#allocation2] sm:$0xff]
    %v94 = vld [vmem:[#allocation2 + $0x8] sm:$0xff]
    %v95 = vld [vmem:[#allocation5] sm:$0xff]
    %v96 = vld [vmem:[#allocation5 + $0x8] sm:$0xff]
    %v97 = vld [vmem:[#allocation5 + $0x10] sm:$0xff]
    %v98 = vld [vmem:[#allocation5 + $0x18] sm:$0xff]
    %v99 = vld [vmem:[#allocation5 + $0x20] sm:$0xff]
    %v100 = vld [vmem:[#allocation5 + $0x28] sm:$0xff]
    %v101 = vld [vmem:[#allocation5 + $0x30] sm:$0xff]
    %v102 = vld [vmem:[#allocation5 + $0x38] sm:$0xff]
    %v103 = vld [vmem:[#allocation7] sm:$0xf]
    %v105 = vlaneseq
    %v106 = vshrl.u32 %v105, 7
    %v107 = vsub.s32 0, %v106
    %v108 = vrot.slane %v103, %v107
    %v109 = vlaneseq
    %v110 = vshrl.u32 %v109, 7
    %v111 = vsub.s32 1, %v110
    %v112 = vrot.slane %v103, %v111
    %v113 = vlaneseq
    %v114 = vshrl.u32 %v113, 7
    %v115 = vsub.s32 2, %v114
    %v116 = vrot.slane %v103, %v115
    %v117 = vlaneseq
    %v118 = vshrl.u32 %v117, 7
    %v119 = vsub.s32 3, %v118
    %v120 = vrot.slane %v103, %v119
    %vm125 = vcmask 130048
    %v127 = vsel %vm125, %v93, 0
    %v130 = vsel %vm125, %v94, 0
    %132 = vmatprep.subr.mxu0 0.0
    %133 = vmatpush1.msra.mxu0 0.0
    %134 = vmatprep.subr.mxu0 0.0
    %135 = vmatpush1.msra.mxu0 0.0
    %136 = vmatprep.subr.mxu0 0.0
    %137 = vmatpush1.msra.mxu0 0.0
    %138 = vmatprep.subr.mxu0 0.0
    %139 = vmatpush1.msra.mxu0 0.0
    %140 = vmatprep.subr.mxu0 0.0
    %141 = vmatpush1.msra.mxu0 0.0
    %142 = vmatprep.subr.mxu0 0.0
    %143 = vmatpush1.msra.mxu0 0.0
    %144 = vmatprep.subr.mxu0 0.0
    %145 = vmatpush1.msra.mxu0 0.0
    %146 = vmatprep.subr.mxu0 0.0
    %147 = vmatpush1.msra.mxu0 0.0
    %148 = vmatprep.subr.mxu0 0.0
    %149 = vmatpush1.msra.mxu0 0.0
    %150 = vmatprep.subr.mxu0 0.0
    %151 = vmatpush1.msra.mxu0 0.0
    %152 = vmatprep.subr.mxu0 0.0
    %153 = vmatpush1.msra.mxu0 0.0
    %154 = vmatprep.subr.mxu0 0.0
    %155 = vmatpush1.msra.mxu0 0.0
    %156 = vmatprep.subr.mxu0 0.0
    %157 = vmatpush1.msra.mxu0 0.0
    %158 = vmatprep.subr.mxu0 0.0
    %159 = vmatpush1.msra.mxu0 0.0
    %160 = vmatprep.subr.mxu0 %v100
    %161 = vmatpush1.msra.mxu0 %v99
    %162 = vmatprep.subr.mxu0 %v96
    %163 = vmatpush1.msra.mxu0 %v95
    %164 = vmatprep.subr.mxu0 0.0
    %165 = vmatpush2.msra.mxu0 0.0
    %166 = vmatprep.subr.mxu0 0.0
    %167 = vmatpush2.msra.mxu0 0.0
    %168 = vmatprep.subr.mxu0 0.0
    %169 = vmatpush2.msra.mxu0 0.0
    %170 = vmatprep.subr.mxu0 0.0
    %171 = vmatpush2.msra.mxu0 0.0
    %172 = vmatprep.subr.mxu0 0.0
    %173 = vmatpush2.msra.mxu0 0.0
    %174 = vmatprep.subr.mxu0 0.0
    %175 = vmatpush2.msra.mxu0 0.0
    %176 = vmatprep.subr.mxu0 0.0
    %177 = vmatpush2.msra.mxu0 0.0
    %178 = vmatprep.subr.mxu0 0.0
    %179 = vmatpush2.msra.mxu0 0.0
    %180 = vmatprep.subr.mxu0 0.0
    %181 = vmatpush2.msra.mxu0 0.0
    %182 = vmatprep.subr.mxu0 0.0
    %183 = vmatpush2.msra.mxu0 0.0
    %184 = vmatprep.subr.mxu0 0.0
    %185 = vmatpush2.msra.mxu0 0.0
    %186 = vmatprep.subr.mxu0 0.0
    %187 = vmatpush2.msra.mxu0 0.0
    %188 = vmatprep.subr.mxu0 0.0
    %189 = vmatpush2.msra.mxu0 0.0
    %190 = vmatprep.subr.mxu0 0.0
    %191 = vmatpush2.msra.mxu0 0.0
    %192 = vmatprep.subr.mxu0 0.0
    %193 = vmatpush2.msra.mxu0 0.0
    %194 = vmatprep.subr.mxu0 0.0
    %195 = vmatpush2.msra.mxu0 0.0
    %196 = vmatprep.mubr.f32.mxu0 0.0
    %197 = vmatmul.mubr.f32.gmra.mxu0 %v127
    %v198 = vpop.f32.mrf.mxu0
    %v199 = vadd.f32 %v108, %v198
    %v200 = vpop.f32.mrf.mxu0
    %v201 = vadd.f32 %v112, %v200
    %202 = vmatprep.mubr.f32.mxu0 0.0
    %203 = vmatmul.mubr.f32.gmra.mxu0 %v130
    %v204 = vpop.f32.mrf.mxu0
    %v205 = vadd.f32 %v108, %v204
    %v206 = vpop.f32.mrf.mxu0
    %v207 = vadd.f32 %v112, %v206
    %208 = vdwg.mxu0
    %209 = vmatprep.subr.mxu0 0.0
    %210 = vmatpush1.msra.mxu0 0.0
    %211 = vmatprep.subr.mxu0 0.0
    %212 = vmatpush1.msra.mxu0 0.0
    %213 = vmatprep.subr.mxu0 0.0
    %214 = vmatpush1.msra.mxu0 0.0
    %215 = vmatprep.subr.mxu0 0.0
    %216 = vmatpush1.msra.mxu0 0.0
    %217 = vmatprep.subr.mxu0 0.0
    %218 = vmatpush1.msra.mxu0 0.0
    %219 = vmatprep.subr.mxu0 0.0
    %220 = vmatpush1.msra.mxu0 0.0
    %221 = vmatprep.subr.mxu0 0.0
    %222 = vmatpush1.msra.mxu0 0.0
    %223 = vmatprep.subr.mxu0 0.0
    %224 = vmatpush1.msra.mxu0 0.0
    %225 = vmatprep.subr.mxu0 0.0
    %226 = vmatpush1.msra.mxu0 0.0
    %227 = vmatprep.subr.mxu0 0.0
    %228 = vmatpush1.msra.mxu0 0.0
    %229 = vmatprep.subr.mxu0 0.0
    %230 = vmatpush1.msra.mxu0 0.0
    %231 = vmatprep.subr.mxu0 0.0
    %232 = vmatpush1.msra.mxu0 0.0
    %233 = vmatprep.subr.mxu0 0.0
    %234 = vmatpush1.msra.mxu0 0.0
    %235 = vmatprep.subr.mxu0 0.0
    %236 = vmatpush1.msra.mxu0 0.0
    %237 = vmatprep.subr.mxu0 %v102
    %238 = vmatpush1.msra.mxu0 %v101
    %239 = vmatprep.subr.mxu0 %v98
    %240 = vmatpush1.msra.mxu0 %v97
    %241 = vmatprep.subr.mxu0 0.0
    %242 = vmatpush2.msra.mxu0 0.0
    %243 = vmatprep.subr.mxu0 0.0
    %244 = vmatpush2.msra.mxu0 0.0
    %245 = vmatprep.subr.mxu0 0.0
    %246 = vmatpush2.msra.mxu0 0.0
    %247 = vmatprep.subr.mxu0 0.0
    %248 = vmatpush2.msra.mxu0 0.0
    %249 = vmatprep.subr.mxu0 0.0
    %250 = vmatpush2.msra.mxu0 0.0
    %251 = vmatprep.subr.mxu0 0.0
    %252 = vmatpush2.msra.mxu0 0.0
    %253 = vmatprep.subr.mxu0 0.0
    %254 = vmatpush2.msra.mxu0 0.0
    %255 = vmatprep.subr.mxu0 0.0
    %256 = vmatpush2.msra.mxu0 0.0
    %257 = vmatprep.subr.mxu0 0.0
    %258 = vmatpush2.msra.mxu0 0.0
    %259 = vmatprep.subr.mxu0 0.0
    %260 = vmatpush2.msra.mxu0 0.0
    %261 = vmatprep.subr.mxu0 0.0
    %262 = vmatpush2.msra.mxu0 0.0
    %263 = vmatprep.subr.mxu0 0.0
    %264 = vmatpush2.msra.mxu0 0.0
    %265 = vmatprep.subr.mxu0 0.0
    %266 = vmatpush2.msra.mxu0 0.0
    %267 = vmatprep.subr.mxu0 0.0
    %268 = vmatpush2.msra.mxu0 0.0
    %269 = vmatprep.subr.mxu0 0.0
    %270 = vmatpush2.msra.mxu0 0.0
    %271 = vmatprep.subr.mxu0 0.0
    %272 = vmatpush2.msra.mxu0 0.0
    %273 = vmatprep.mubr.f32.mxu0 0.0
    %274 = vmatmul.mubr.f32.gmra.mxu0 %v127
    %v275 = vpop.f32.mrf.mxu0
    %v276 = vadd.f32 %v116, %v275
    %v277 = vpop.f32.mrf.mxu0
    %v278 = vadd.f32 %v120, %v277
    %279 = vmatprep.mubr.f32.mxu0 0.0
    %280 = vmatmul.mubr.f32.gmra.mxu0 %v130
    %v281 = vpop.f32.mrf.mxu0
    %v282 = vadd.f32 %v116, %v281
    %v283 = vpop.f32.mrf.mxu0
    %v284 = vadd.f32 %v120, %v283
    %285 = vdwg.mxu0
    %v286 = vmax.f32 %v199, 0.0
    %v287 = vmax.f32 %v201, 0.0
    %v288 = vmax.f32 %v276, 0.0
    %v289 = vmax.f32 %v278, 0.0
    %v290 = vmax.f32 %v205, 0.0
    %v291 = vmax.f32 %v207, 0.0
    %v292 = vmax.f32 %v282, 0.0
    %v293 = vmax.f32 %v284, 0.0
    %v294 = vld [vmem:[#allocation8] sm:$0xff]
    %v295 = vld [vmem:[#allocation8 + $0x8] sm:$0xff]
    %v296 = vld [vmem:[#allocation8 + $0x10] sm:$0xff]
    %v297 = vld [vmem:[#allocation8 + $0x18] sm:$0xff]
    %v298 = vld [vmem:[#allocation8 + $0x20] sm:$0xff]
    %v299 = vld [vmem:[#allocation8 + $0x28] sm:$0xff]
    %v300 = vld [vmem:[#allocation8 + $0x30] sm:$0xff]
    %v301 = vld [vmem:[#allocation8 + $0x38] sm:$0xff]
    %v302 = vld [vmem:[#allocation8 + $0x40] sm:$0xff]
    %v303 = vld [vmem:[#allocation8 + $0x48] sm:$0xff]
    %v304 = vld [vmem:[#allocation8 + $0x50] sm:$0xff]
    %v305 = vld [vmem:[#allocation8 + $0x58] sm:$0xff]
    %v306 = vld [vmem:[#allocation8 + $0x60] sm:$0xff]
    %v307 = vld [vmem:[#allocation8 + $0x68] sm:$0xff]
    %v308 = vld [vmem:[#allocation8 + $0x70] sm:$0xff]
    %v309 = vld [vmem:[#allocation8 + $0x78] sm:$0xff]
    %v310 = vld [vmem:[#allocation8 + $0x80] sm:$0xff]
    %v311 = vld [vmem:[#allocation8 + $0x88] sm:$0xff]
    %v312 = vld [vmem:[#allocation8 + $0x90] sm:$0xff]
    %v313 = vld [vmem:[#allocation8 + $0x98] sm:$0xff]
    %v314 = vld [vmem:[#allocation8 + $0xa0] sm:$0xff]
    %v315 = vld [vmem:[#allocation8 + $0xa8] sm:$0xff]
    %v316 = vld [vmem:[#allocation8 + $0xb0] sm:$0xff]
    %v317 = vld [vmem:[#allocation8 + $0xb8] sm:$0xff]
    %v318 = vld [vmem:[#allocation8 + $0xc0] sm:$0xff]
    %v319 = vld [vmem:[#allocation8 + $0xc8] sm:$0xff]
    %v320 = vld [vmem:[#allocation8 + $0xd0] sm:$0xff]
    %v321 = vld [vmem:[#allocation8 + $0xd8] sm:$0xff]
    %v322 = vld [vmem:[#allocation8 + $0xe0] sm:$0xff]
    %v323 = vld [vmem:[#allocation8 + $0xe8] sm:$0xff]
    %v324 = vld [vmem:[#allocation8 + $0xf0] sm:$0xff]
    %v325 = vld [vmem:[#allocation8 + $0xf8] sm:$0xff]
    %v326 = vld [vmem:[#allocation8 + $0x100] sm:$0xff]
    %v327 = vld [vmem:[#allocation8 + $0x108] sm:$0xff]
    %v328 = vld [vmem:[#allocation8 + $0x110] sm:$0xff]
    %v329 = vld [vmem:[#allocation8 + $0x118] sm:$0xff]
    %v330 = vld [vmem:[#allocation8 + $0x120] sm:$0xff]
    %v331 = vld [vmem:[#allocation8 + $0x128] sm:$0xff]
    %v332 = vld [vmem:[#allocation8 + $0x130] sm:$0xff]
    %v333 = vld [vmem:[#allocation8 + $0x138] sm:$0xff]
    %v334 = vld [vmem:[#allocation8 + $0x140] sm:$0xff]
    %v335 = vld [vmem:[#allocation8 + $0x148] sm:$0xff]
    %v336 = vld [vmem:[#allocation8 + $0x150] sm:$0xff]
    %v337 = vld [vmem:[#allocation8 + $0x158] sm:$0xff]
    %v338 = vld [vmem:[#allocation8 + $0x160] sm:$0xff]
    %v339 = vld [vmem:[#allocation8 + $0x168] sm:$0xff]
    %v340 = vld [vmem:[#allocation8 + $0x170] sm:$0xff]
    %v341 = vld [vmem:[#allocation8 + $0x178] sm:$0xff]
    %v342 = vld [vmem:[#allocation8 + $0x180] sm:$0xff]
    %v343 = vld [vmem:[#allocation8 + $0x188] sm:$0xff]
    %v344 = vld [vmem:[#allocation8 + $0x190] sm:$0xff]
    %v345 = vld [vmem:[#allocation8 + $0x198] sm:$0xff]
    %v346 = vld [vmem:[#allocation8 + $0x1a0] sm:$0xff]
    %v347 = vld [vmem:[#allocation8 + $0x1a8] sm:$0xff]
    %v348 = vld [vmem:[#allocation8 + $0x1b0] sm:$0xff]
    %v349 = vld [vmem:[#allocation8 + $0x1b8] sm:$0xff]
    %v350 = vld [vmem:[#allocation8 + $0x1c0] sm:$0xff]
    %v351 = vld [vmem:[#allocation8 + $0x1c8] sm:$0xff]
    %v352 = vld [vmem:[#allocation8 + $0x1d0] sm:$0xff]
    %v353 = vld [vmem:[#allocation8 + $0x1d8] sm:$0xff]
    %v354 = vld [vmem:[#allocation8 + $0x1e0] sm:$0xff]
    %v355 = vld [vmem:[#allocation8 + $0x1e8] sm:$0xff]
    %v356 = vld [vmem:[#allocation8 + $0x1f0] sm:$0xff]
    %v357 = vld [vmem:[#allocation8 + $0x1f8] sm:$0xff]
    %v358 = vld [vmem:[#allocation8 + $0x200] sm:$0xff]
    %v359 = vld [vmem:[#allocation8 + $0x208] sm:$0xff]
    %v360 = vld [vmem:[#allocation8 + $0x210] sm:$0xff]
    %v361 = vld [vmem:[#allocation8 + $0x218] sm:$0xff]
    %v362 = vld [vmem:[#allocation8 + $0x220] sm:$0xff]
    %v363 = vld [vmem:[#allocation8 + $0x228] sm:$0xff]
    %v364 = vld [vmem:[#allocation8 + $0x230] sm:$0xff]
    %v365 = vld [vmem:[#allocation8 + $0x238] sm:$0xff]
    %v366 = vld [vmem:[#allocation8 + $0x240] sm:$0xff]
    %v367 = vld [vmem:[#allocation8 + $0x248] sm:$0xff]
    %v368 = vld [vmem:[#allocation8 + $0x250] sm:$0xff]
    %v369 = vld [vmem:[#allocation8 + $0x258] sm:$0xff]
    %v370 = vld [vmem:[#allocation8 + $0x260] sm:$0xff]
    %v371 = vld [vmem:[#allocation8 + $0x268] sm:$0xff]
    %v372 = vld [vmem:[#allocation8 + $0x270] sm:$0xff]
    %v373 = vld [vmem:[#allocation8 + $0x278] sm:$0xff]
    %v374 = vld [vmem:[#allocation8 + $0x280] sm:$0xff]
    %v375 = vld [vmem:[#allocation8 + $0x288] sm:$0xff]
    %v376 = vld [vmem:[#allocation8 + $0x290] sm:$0xff]
    %v377 = vld [vmem:[#allocation8 + $0x298] sm:$0xff]
    %v378 = vld [vmem:[#allocation8 + $0x2a0] sm:$0xff]
    %v379 = vld [vmem:[#allocation8 + $0x2a8] sm:$0xff]
    %v380 = vld [vmem:[#allocation8 + $0x2b0] sm:$0xff]
    %v381 = vld [vmem:[#allocation8 + $0x2b8] sm:$0xff]
    %v382 = vld [vmem:[#allocation8 + $0x2c0] sm:$0xff]
    %v383 = vld [vmem:[#allocation8 + $0x2c8] sm:$0xff]
    %v384 = vld [vmem:[#allocation8 + $0x2d0] sm:$0xff]
    %v385 = vld [vmem:[#allocation8 + $0x2d8] sm:$0xff]
    %v386 = vld [vmem:[#allocation8 + $0x2e0] sm:$0xff]
    %v387 = vld [vmem:[#allocation8 + $0x2e8] sm:$0xff]
    %v388 = vld [vmem:[#allocation8 + $0x2f0] sm:$0xff]
    %v389 = vld [vmem:[#allocation8 + $0x2f8] sm:$0xff]
    %v390 = vld [vmem:[#allocation8 + $0x300] sm:$0xff]
    %v391 = vld [vmem:[#allocation8 + $0x308] sm:$0xff]
    %v392 = vld [vmem:[#allocation8 + $0x310] sm:$0xff]
    %v393 = vld [vmem:[#allocation8 + $0x318] sm:$0xff]
    %v394 = vld [vmem:[#allocation8 + $0x320] sm:$0xff]
    %v395 = vld [vmem:[#allocation8 + $0x328] sm:$0xff]
    %v396 = vld [vmem:[#allocation8 + $0x330] sm:$0xff]
    %v397 = vld [vmem:[#allocation8 + $0x338] sm:$0xff]
    %v398 = vld [vmem:[#allocation8 + $0x340] sm:$0xff]
    %v399 = vld [vmem:[#allocation8 + $0x348] sm:$0xff]
    %v400 = vld [vmem:[#allocation8 + $0x350] sm:$0xff]
    %v401 = vld [vmem:[#allocation8 + $0x358] sm:$0xff]
    %v402 = vld [vmem:[#allocation8 + $0x360] sm:$0xff]
    %v403 = vld [vmem:[#allocation8 + $0x368] sm:$0xff]
    %v404 = vld [vmem:[#allocation8 + $0x370] sm:$0xff]
    %v405 = vld [vmem:[#allocation8 + $0x378] sm:$0xff]
    %v406 = vld [vmem:[#allocation8 + $0x380] sm:$0xff]
    %v407 = vld [vmem:[#allocation8 + $0x388] sm:$0xff]
    %v408 = vld [vmem:[#allocation8 + $0x390] sm:$0xff]
    %v409 = vld [vmem:[#allocation8 + $0x398] sm:$0xff]
    %v410 = vld [vmem:[#allocation8 + $0x3a0] sm:$0xff]
    %v411 = vld [vmem:[#allocation8 + $0x3a8] sm:$0xff]
    %v412 = vld [vmem:[#allocation8 + $0x3b0] sm:$0xff]
    %v413 = vld [vmem:[#allocation8 + $0x3b8] sm:$0xff]
    %v414 = vld [vmem:[#allocation8 + $0x3c0] sm:$0xff]
    %v415 = vld [vmem:[#allocation8 + $0x3c8] sm:$0xff]
    %v416 = vld [vmem:[#allocation8 + $0x3d0] sm:$0xff]
    %v417 = vld [vmem:[#allocation8 + $0x3d8] sm:$0xff]
    %v418 = vld [vmem:[#allocation8 + $0x3e0] sm:$0xff]
    %v419 = vld [vmem:[#allocation8 + $0x3e8] sm:$0xff]
    %v420 = vld [vmem:[#allocation8 + $0x3f0] sm:$0xff]
    %v421 = vld [vmem:[#allocation8 + $0x3f8] sm:$0xff]
    %v422 = vld [vmem:[#allocation8 + $0x400] sm:$0xff]
    %v423 = vld [vmem:[#allocation8 + $0x408] sm:$0xff]
    %v424 = vld [vmem:[#allocation8 + $0x410] sm:$0xff]
    %v425 = vld [vmem:[#allocation8 + $0x418] sm:$0xff]
    %v426 = vld [vmem:[#allocation8 + $0x420] sm:$0xff]
    %v427 = vld [vmem:[#allocation8 + $0x428] sm:$0xff]
    %v428 = vld [vmem:[#allocation8 + $0x430] sm:$0xff]
    %v429 = vld [vmem:[#allocation8 + $0x438] sm:$0xff]
    %v430 = vld [vmem:[#allocation8 + $0x440] sm:$0xff]
    %v431 = vld [vmem:[#allocation8 + $0x448] sm:$0xff]
    %v432 = vld [vmem:[#allocation8 + $0x450] sm:$0xff]
    %v433 = vld [vmem:[#allocation8 + $0x458] sm:$0xff]
    %v434 = vld [vmem:[#allocation8 + $0x460] sm:$0xff]
    %v435 = vld [vmem:[#allocation8 + $0x468] sm:$0xff]
    %v436 = vld [vmem:[#allocation8 + $0x470] sm:$0xff]
    %v437 = vld [vmem:[#allocation8 + $0x478] sm:$0xff]
    %v438 = vld [vmem:[#allocation8 + $0x480] sm:$0xff]
    %v439 = vld [vmem:[#allocation8 + $0x488] sm:$0xff]
    %v440 = vld [vmem:[#allocation8 + $0x490] sm:$0xff]
    %v441 = vld [vmem:[#allocation8 + $0x498] sm:$0xff]
    %v442 = vld [vmem:[#allocation8 + $0x4a0] sm:$0xff]
    %v443 = vld [vmem:[#allocation8 + $0x4a8] sm:$0xff]
    %v444 = vld [vmem:[#allocation8 + $0x4b0] sm:$0xff]
    %v445 = vld [vmem:[#allocation8 + $0x4b8] sm:$0xff]
    %v446 = vld [vmem:[#allocation8 + $0x4c0] sm:$0xff]
    %v447 = vld [vmem:[#allocation8 + $0x4c8] sm:$0xff]
    %v448 = vld [vmem:[#allocation8 + $0x4d0] sm:$0xff]
    %v449 = vld [vmem:[#allocation8 + $0x4d8] sm:$0xff]
    %v450 = vld [vmem:[#allocation8 + $0x4e0] sm:$0xff]
    %v451 = vld [vmem:[#allocation8 + $0x4e8] sm:$0xff]
    %v452 = vld [vmem:[#allocation8 + $0x4f0] sm:$0xff]
    %v453 = vld [vmem:[#allocation8 + $0x4f8] sm:$0xff]
    %v454 = vld [vmem:[#allocation8 + $0x500] sm:$0xff]
    %v455 = vld [vmem:[#allocation8 + $0x508] sm:$0xff]
    %v456 = vld [vmem:[#allocation8 + $0x510] sm:$0xff]
    %v457 = vld [vmem:[#allocation8 + $0x518] sm:$0xff]
    %v458 = vld [vmem:[#allocation8 + $0x520] sm:$0xff]
    %v459 = vld [vmem:[#allocation8 + $0x528] sm:$0xff]
    %v460 = vld [vmem:[#allocation8 + $0x530] sm:$0xff]
    %v461 = vld [vmem:[#allocation8 + $0x538] sm:$0xff]
    %v462 = vld [vmem:[#allocation8 + $0x540] sm:$0xff]
    %v463 = vld [vmem:[#allocation8 + $0x548] sm:$0xff]
    %v464 = vld [vmem:[#allocation8 + $0x550] sm:$0xff]
    %v465 = vld [vmem:[#allocation8 + $0x558] sm:$0xff]
    %v466 = vld [vmem:[#allocation8 + $0x560] sm:$0xff]
    %v467 = vld [vmem:[#allocation8 + $0x568] sm:$0xff]
    %v468 = vld [vmem:[#allocation8 + $0x570] sm:$0xff]
    %v469 = vld [vmem:[#allocation8 + $0x578] sm:$0xff]
    %v470 = vld [vmem:[#allocation8 + $0x580] sm:$0xff]
    %v471 = vld [vmem:[#allocation8 + $0x588] sm:$0xff]
    %v472 = vld [vmem:[#allocation8 + $0x590] sm:$0xff]
    %v473 = vld [vmem:[#allocation8 + $0x598] sm:$0xff]
    %v474 = vld [vmem:[#allocation8 + $0x5a0] sm:$0xff]
    %v475 = vld [vmem:[#allocation8 + $0x5a8] sm:$0xff]
    %v476 = vld [vmem:[#allocation8 + $0x5b0] sm:$0xff]
    %v477 = vld [vmem:[#allocation8 + $0x5b8] sm:$0xff]
    %v478 = vld [vmem:[#allocation8 + $0x5c0] sm:$0xff]
    %v479 = vld [vmem:[#allocation8 + $0x5c8] sm:$0xff]
    %v480 = vld [vmem:[#allocation8 + $0x5d0] sm:$0xff]
    %v481 = vld [vmem:[#allocation8 + $0x5d8] sm:$0xff]
    %v482 = vld [vmem:[#allocation8 + $0x5e0] sm:$0xff]
    %v483 = vld [vmem:[#allocation8 + $0x5e8] sm:$0xff]
    %v484 = vld [vmem:[#allocation8 + $0x5f0] sm:$0xff]
    %v485 = vld [vmem:[#allocation8 + $0x5f8] sm:$0xff]
    %v486 = vld [vmem:[%s4] sm:$0x7]
    %v488 = vlaneseq
    %v489 = vshrl.u32 %v488, 7
    %v490 = vsub.s32 0, %v489
    %v491 = vrot.slane %v486, %v490
    %v492 = vlaneseq
    %v493 = vshrl.u32 %v492, 7
    %v494 = vsub.s32 1, %v493
    %v495 = vrot.slane %v486, %v494
    %v496 = vlaneseq
    %v497 = vshrl.u32 %v496, 7
    %v498 = vsub.s32 2, %v497
    %v499 = vrot.slane %v486, %v498
    %503 = vmatprep.subr.mxu0 %v340
    %504 = vmatpush1.msra.mxu0 %v339
    %505 = vmatprep.subr.mxu0 %v337
    %506 = vmatpush1.msra.mxu0 %v336
    %507 = vmatprep.subr.mxu0 %v334
    %508 = vmatpush1.msra.mxu0 %v333
    %509 = vmatprep.subr.mxu0 %v331
    %510 = vmatpush1.msra.mxu0 %v330
    %511 = vmatprep.subr.mxu0 %v328
    %512 = vmatpush1.msra.mxu0 %v327
    %513 = vmatprep.subr.mxu0 %v325
    %514 = vmatpush1.msra.mxu0 %v324
    %515 = vmatprep.subr.mxu0 %v322
    %516 = vmatpush1.msra.mxu0 %v321
    %517 = vmatprep.subr.mxu0 %v319
    %518 = vmatpush1.msra.mxu0 %v318
    %519 = vmatprep.subr.mxu0 %v316
    %520 = vmatpush1.msra.mxu0 %v315
    %521 = vmatprep.subr.mxu0 %v313
    %522 = vmatpush1.msra.mxu0 %v312
    %523 = vmatprep.subr.mxu0 %v310
    %524 = vmatpush1.msra.mxu0 %v309
    %525 = vmatprep.subr.mxu0 %v307
    %526 = vmatpush1.msra.mxu0 %v306
    %527 = vmatprep.subr.mxu0 %v304
    %528 = vmatpush1.msra.mxu0 %v303
    %529 = vmatprep.subr.mxu0 %v301
    %530 = vmatpush1.msra.mxu0 %v300
    %531 = vmatprep.subr.mxu0 %v298
    %532 = vmatpush1.msra.mxu0 %v297
    %533 = vmatprep.subr.mxu0 %v295
    %534 = vmatpush1.msra.mxu0 %v294
    %535 = vmatprep.subr.mxu0 %v388
    %536 = vmatpush2.msra.mxu0 %v387
    %537 = vmatprep.subr.mxu0 %v385
    %538 = vmatpush2.msra.mxu0 %v384
    %539 = vmatprep.subr.mxu0 %v382
    %540 = vmatpush2.msra.mxu0 %v381
    %541 = vmatprep.subr.mxu0 %v379
    %542 = vmatpush2.msra.mxu0 %v378
    %543 = vmatprep.subr.mxu0 %v376
    %544 = vmatpush2.msra.mxu0 %v375
    %545 = vmatprep.subr.mxu0 %v373
    %546 = vmatpush2.msra.mxu0 %v372
    %547 = vmatprep.subr.mxu0 %v370
    %548 = vmatpush2.msra.mxu0 %v369
    %549 = vmatprep.subr.mxu0 %v367
    %550 = vmatpush2.msra.mxu0 %v366
    %551 = vmatprep.subr.mxu0 %v364
    %552 = vmatpush2.msra.mxu0 %v363
    %553 = vmatprep.subr.mxu0 %v361
    %554 = vmatpush2.msra.mxu0 %v360
    %555 = vmatprep.subr.mxu0 %v358
    %556 = vmatpush2.msra.mxu0 %v357
    %557 = vmatprep.subr.mxu0 %v355
    %558 = vmatpush2.msra.mxu0 %v354
    %559 = vmatprep.subr.mxu0 %v352
    %560 = vmatpush2.msra.mxu0 %v351
    %561 = vmatprep.subr.mxu0 %v349
    %562 = vmatpush2.msra.mxu0 %v348
    %563 = vmatprep.subr.mxu0 %v346
    %564 = vmatpush2.msra.mxu0 %v345
    %565 = vmatprep.subr.mxu0 %v343
    %566 = vmatpush2.msra.mxu0 %v342
    %567 = vmatprep.mubr.f32.mxu0 %v287
    %568 = vmatmul.mubr.f32.gmra.mxu0 %v286
    %v569 = vpop.f32.mrf.mxu0
    %v570 = vadd.f32 %v491, %v569
    %v571 = vpop.f32.mrf.mxu0
    %v572 = vadd.f32 %v495, %v571
    %573 = vmatprep.mubr.f32.mxu0 %v291
    %574 = vmatmul.mubr.f32.gmra.mxu0 %v290
    %v575 = vpop.f32.mrf.mxu0
    %v576 = vadd.f32 %v491, %v575
    %v577 = vpop.f32.mrf.mxu0
    %v578 = vadd.f32 %v495, %v577
    %579 = vdwg.mxu0
    %580 = vmatprep.subr.mxu0 %v436
    %581 = vmatpush1.msra.mxu0 %v435
    %582 = vmatprep.subr.mxu0 %v433
    %583 = vmatpush1.msra.mxu0 %v432
    %584 = vmatprep.subr.mxu0 %v430
    %585 = vmatpush1.msra.mxu0 %v429
    %586 = vmatprep.subr.mxu0 %v427
    %587 = vmatpush1.msra.mxu0 %v426
    %588 = vmatprep.subr.mxu0 %v424
    %589 = vmatpush1.msra.mxu0 %v423
    %590 = vmatprep.subr.mxu0 %v421
    %591 = vmatpush1.msra.mxu0 %v420
    %592 = vmatprep.subr.mxu0 %v418
    %593 = vmatpush1.msra.mxu0 %v417
    %594 = vmatprep.subr.mxu0 %v415
    %595 = vmatpush1.msra.mxu0 %v414
    %596 = vmatprep.subr.mxu0 %v412
    %597 = vmatpush1.msra.mxu0 %v411
    %598 = vmatprep.subr.mxu0 %v409
    %599 = vmatpush1.msra.mxu0 %v408
    %600 = vmatprep.subr.mxu0 %v406
    %601 = vmatpush1.msra.mxu0 %v405
    %602 = vmatprep.subr.mxu0 %v403
    %603 = vmatpush1.msra.mxu0 %v402
    %604 = vmatprep.subr.mxu0 %v400
    %605 = vmatpush1.msra.mxu0 %v399
    %606 = vmatprep.subr.mxu0 %v397
    %607 = vmatpush1.msra.mxu0 %v396
    %608 = vmatprep.subr.mxu0 %v394
    %609 = vmatpush1.msra.mxu0 %v393
    %610 = vmatprep.subr.mxu0 %v391
    %611 = vmatpush1.msra.mxu0 %v390
    %612 = vmatprep.subr.mxu0 %v484
    %613 = vmatpush2.msra.mxu0 %v483
    %614 = vmatprep.subr.mxu0 %v481
    %615 = vmatpush2.msra.mxu0 %v480
    %616 = vmatprep.subr.mxu0 %v478
    %617 = vmatpush2.msra.mxu0 %v477
    %618 = vmatprep.subr.mxu0 %v475
    %619 = vmatpush2.msra.mxu0 %v474
    %620 = vmatprep.subr.mxu0 %v472
    %621 = vmatpush2.msra.mxu0 %v471
    %622 = vmatprep.subr.mxu0 %v469
    %623 = vmatpush2.msra.mxu0 %v468
    %624 = vmatprep.subr.mxu0 %v466
    %625 = vmatpush2.msra.mxu0 %v465
    %626 = vmatprep.subr.mxu0 %v463
    %627 = vmatpush2.msra.mxu0 %v462
    %628 = vmatprep.subr.mxu0 %v460
    %629 = vmatpush2.msra.mxu0 %v459
    %630 = vmatprep.subr.mxu0 %v457
    %631 = vmatpush2.msra.mxu0 %v456
    %632 = vmatprep.subr.mxu0 %v454
    %633 = vmatpush2.msra.mxu0 %v453
    %634 = vmatprep.subr.mxu0 %v451
    %635 = vmatpush2.msra.mxu0 %v450
    %636 = vmatprep.subr.mxu0 %v448
    %637 = vmatpush2.msra.mxu0 %v447
    %638 = vmatprep.subr.mxu0 %v445
    %639 = vmatpush2.msra.mxu0 %v444
    %640 = vmatprep.subr.mxu0 %v442
    %641 = vmatpush2.msra.mxu0 %v441
    %642 = vmatprep.subr.mxu0 %v439
    %643 = vmatpush2.msra.mxu0 %v438
    %644 = vmatprep.mubr.f32.mxu0 %v289
    %645 = vmatmul.mubr.f32.gmra.mxu0 %v288
    %v646 = vpop.f32.mrf.mxu0
    %v647 = vadd.f32 %v570, %v646
    %v648 = vpop.f32.mrf.mxu0
    %v649 = vadd.f32 %v572, %v648
    %650 = vmatprep.mubr.f32.mxu0 %v293
    %651 = vmatmul.mubr.f32.gmra.mxu0 %v292
    %v652 = vpop.f32.mrf.mxu0
    %v653 = vadd.f32 %v576, %v652
    %v654 = vpop.f32.mrf.mxu0
    %v655 = vadd.f32 %v578, %v654
    %656 = vdwg.mxu0
    %657 = vmatprep.subr.mxu0 0.0
    %658 = vmatpush1.msra.mxu0 %v341
    %659 = vmatprep.subr.mxu0 0.0
    %660 = vmatpush1.msra.mxu0 %v338
    %661 = vmatprep.subr.mxu0 0.0
    %662 = vmatpush1.msra.mxu0 %v335
    %663 = vmatprep.subr.mxu0 0.0
    %664 = vmatpush1.msra.mxu0 %v332
    %665 = vmatprep.subr.mxu0 0.0
    %666 = vmatpush1.msra.mxu0 %v329
    %667 = vmatprep.subr.mxu0 0.0
    %668 = vmatpush1.msra.mxu0 %v326
    %669 = vmatprep.subr.mxu0 0.0
    %670 = vmatpush1.msra.mxu0 %v323
    %671 = vmatprep.subr.mxu0 0.0
    %672 = vmatpush1.msra.mxu0 %v320
    %673 = vmatprep.subr.mxu0 0.0
    %674 = vmatpush1.msra.mxu0 %v317
    %675 = vmatprep.subr.mxu0 0.0
    %676 = vmatpush1.msra.mxu0 %v314
    %677 = vmatprep.subr.mxu0 0.0
    %678 = vmatpush1.msra.mxu0 %v311
    %679 = vmatprep.subr.mxu0 0.0
    %680 = vmatpush1.msra.mxu0 %v308
    %681 = vmatprep.subr.mxu0 0.0
    %682 = vmatpush1.msra.mxu0 %v305
    %683 = vmatprep.subr.mxu0 0.0
    %684 = vmatpush1.msra.mxu0 %v302
    %685 = vmatprep.subr.mxu0 0.0
    %686 = vmatpush1.msra.mxu0 %v299
    %687 = vmatprep.subr.mxu0 0.0
    %688 = vmatpush1.msra.mxu0 %v296
    %689 = vmatprep.subr.mxu0 0.0
    %690 = vmatpush2.msra.mxu0 %v389
    %691 = vmatprep.subr.mxu0 0.0
    %692 = vmatpush2.msra.mxu0 %v386
    %693 = vmatprep.subr.mxu0 0.0
    %694 = vmatpush2.msra.mxu0 %v383
    %695 = vmatprep.subr.mxu0 0.0
    %696 = vmatpush2.msra.mxu0 %v380
    %697 = vmatprep.subr.mxu0 0.0
    %698 = vmatpush2.msra.mxu0 %v377
    %699 = vmatprep.subr.mxu0 0.0
    %700 = vmatpush2.msra.mxu0 %v374
    %701 = vmatprep.subr.mxu0 0.0
    %702 = vmatpush2.msra.mxu0 %v371
    %703 = vmatprep.subr.mxu0 0.0
    %704 = vmatpush2.msra.mxu0 %v368
    %705 = vmatprep.subr.mxu0 0.0
    %706 = vmatpush2.msra.mxu0 %v365
    %707 = vmatprep.subr.mxu0 0.0
    %708 = vmatpush2.msra.mxu0 %v362
    %709 = vmatprep.subr.mxu0 0.0
    %710 = vmatpush2.msra.mxu0 %v359
    %711 = vmatprep.subr.mxu0 0.0
    %712 = vmatpush2.msra.mxu0 %v356
    %713 = vmatprep.subr.mxu0 0.0
    %714 = vmatpush2.msra.mxu0 %v353
    %715 = vmatprep.subr.mxu0 0.0
    %716 = vmatpush2.msra.mxu0 %v350
    %717 = vmatprep.subr.mxu0 0.0
    %718 = vmatpush2.msra.mxu0 %v347
    %719 = vmatprep.subr.mxu0 0.0
    %720 = vmatpush2.msra.mxu0 %v344
    %721 = vmatprep.mubr.f32.mxu0 %v287
    %722 = vmatmul.mubr.f32.gmra.mxu0 %v286
    %v723 = vpop.f32.mrf.mxu0
    %v724 = vadd.f32 %v499, %v723
    %v725 = vpop.f32.mrf.mxu0
    %726 = vmatprep.mubr.f32.mxu0 %v291
    %727 = vmatmul.mubr.f32.gmra.mxu0 %v290
    %v728 = vpop.f32.mrf.mxu0
    %v729 = vadd.f32 %v499, %v728
    %v730 = vpop.f32.mrf.mxu0
    %731 = vdwg.mxu0
    %732 = vmatprep.subr.mxu0 0.0
    %733 = vmatpush1.msra.mxu0 %v437
    %734 = vmatprep.subr.mxu0 0.0
    %735 = vmatpush1.msra.mxu0 %v434
    %736 = vmatprep.subr.mxu0 0.0
    %737 = vmatpush1.msra.mxu0 %v431
    %738 = vmatprep.subr.mxu0 0.0
    %739 = vmatpush1.msra.mxu0 %v428
    %740 = vmatprep.subr.mxu0 0.0
    %741 = vmatpush1.msra.mxu0 %v425
    %742 = vmatprep.subr.mxu0 0.0
    %743 = vmatpush1.msra.mxu0 %v422
    %744 = vmatprep.subr.mxu0 0.0
    %745 = vmatpush1.msra.mxu0 %v419
    %746 = vmatprep.subr.mxu0 0.0
    %747 = vmatpush1.msra.mxu0 %v416
    %748 = vmatprep.subr.mxu0 0.0
    %749 = vmatpush1.msra.mxu0 %v413
    %750 = vmatprep.subr.mxu0 0.0
    %751 = vmatpush1.msra.mxu0 %v410
    %752 = vmatprep.subr.mxu0 0.0
    %753 = vmatpush1.msra.mxu0 %v407
    %754 = vmatprep.subr.mxu0 0.0
    %755 = vmatpush1.msra.mxu0 %v404
    %756 = vmatprep.subr.mxu0 0.0
    %757 = vmatpush1.msra.mxu0 %v401
    %758 = vmatprep.subr.mxu0 0.0
    %759 = vmatpush1.msra.mxu0 %v398
    %760 = vmatprep.subr.mxu0 0.0
    %761 = vmatpush1.msra.mxu0 %v395
    %762 = vmatprep.subr.mxu0 0.0
    %763 = vmatpush1.msra.mxu0 %v392
    %764 = vmatprep.subr.mxu0 0.0
    %765 = vmatpush2.msra.mxu0 %v485
    %766 = vmatprep.subr.mxu0 0.0
    %767 = vmatpush2.msra.mxu0 %v482
    %768 = vmatprep.subr.mxu0 0.0
    %769 = vmatpush2.msra.mxu0 %v479
    %770 = vmatprep.subr.mxu0 0.0
    %771 = vmatpush2.msra.mxu0 %v476
    %772 = vmatprep.subr.mxu0 0.0
    %773 = vmatpush2.msra.mxu0 %v473
    %774 = vmatprep.subr.mxu0 0.0
    %775 = vmatpush2.msra.mxu0 %v470
    %776 = vmatprep.subr.mxu0 0.0
    %777 = vmatpush2.msra.mxu0 %v467
    %778 = vmatprep.subr.mxu0 0.0
    %779 = vmatpush2.msra.mxu0 %v464
    %780 = vmatprep.subr.mxu0 0.0
    %781 = vmatpush2.msra.mxu0 %v461
    %782 = vmatprep.subr.mxu0 0.0
    %783 = vmatpush2.msra.mxu0 %v458
    %784 = vmatprep.subr.mxu0 0.0
    %785 = vmatpush2.msra.mxu0 %v455
    %786 = vmatprep.subr.mxu0 0.0
    %787 = vmatpush2.msra.mxu0 %v452
    %788 = vmatprep.subr.mxu0 0.0
    %789 = vmatpush2.msra.mxu0 %v449
    %790 = vmatprep.subr.mxu0 0.0
    %791 = vmatpush2.msra.mxu0 %v446
    %792 = vmatprep.subr.mxu0 0.0
    %793 = vmatpush2.msra.mxu0 %v443
    %794 = vmatprep.subr.mxu0 0.0
    %795 = vmatpush2.msra.mxu0 %v440
    %796 = vmatprep.mubr.f32.mxu0 %v289
    %797 = vmatmul.mubr.f32.gmra.mxu0 %v288
    %v798 = vpop.f32.mrf.mxu0
    %v799 = vadd.f32 %v724, %v798
    %v800 = vpop.f32.mrf.mxu0
    %801 = vmatprep.mubr.f32.mxu0 %v293
    %802 = vmatmul.mubr.f32.gmra.mxu0 %v292
    %v803 = vpop.f32.mrf.mxu0
    %v804 = vadd.f32 %v729, %v803
    %v805 = vpop.f32.mrf.mxu0
    %806 = vdwg.mxu0
    %v807 = vmax.f32 %v647, 0.0
    %v808 = vmax.f32 %v649, 0.0
    %v809 = vmax.f32 %v799, 0.0
    %v810 = vmax.f32 %v653, 0.0
    %v811 = vmax.f32 %v655, 0.0
    %v812 = vmax.f32 %v804, 0.0
    %v813 = vld [vmem:[#allocation10] sm:$0xff]
    %v814 = vld [vmem:[#allocation10 + $0x8] sm:$0xff]
    %v815 = vld [vmem:[#allocation10 + $0x10] sm:$0xff]
    %v816 = vld [vmem:[#allocation10 + $0x18] sm:$0xff]
    %v817 = vld [vmem:[#allocation10 + $0x20] sm:$0xff]
    %v818 = vld [vmem:[#allocation10 + $0x28] sm:$0xff]
    %v819 = vld [vmem:[#allocation10 + $0x30] sm:$0xff]
    %v820 = vld [vmem:[#allocation10 + $0x38] sm:$0xff]
    %v821 = vld [vmem:[#allocation10 + $0x40] sm:$0xff]
    %v822 = vld [vmem:[#allocation10 + $0x48] sm:$0xff]
    %v823 = vld [vmem:[#allocation10 + $0x50] sm:$0xff]
    %v824 = vld [vmem:[#allocation10 + $0x58] sm:$0xff]
    %v825 = vld [vmem:[#allocation10 + $0x60] sm:$0xff]
    %v826 = vld [vmem:[#allocation10 + $0x68] sm:$0xff]
    %v827 = vld [vmem:[#allocation10 + $0x70] sm:$0xff]
    %v828 = vld [vmem:[#allocation10 + $0x78] sm:$0xff]
    %v829 = vld [vmem:[#allocation10 + $0x80] sm:$0xff]
    %v830 = vld [vmem:[#allocation10 + $0x88] sm:$0xff]
    %v831 = vld [vmem:[#allocation10 + $0x90] sm:$0xff]
    %v832 = vld [vmem:[#allocation10 + $0x98] sm:$0xff]
    %v833 = vld [vmem:[#allocation10 + $0xa0] sm:$0xff]
    %v834 = vld [vmem:[#allocation10 + $0xa8] sm:$0xff]
    %v835 = vld [vmem:[#allocation10 + $0xb0] sm:$0xff]
    %v836 = vld [vmem:[#allocation10 + $0xb8] sm:$0xff]
    %v837 = vld [vmem:[#allocation10 + $0xc0] sm:$0xff]
    %v838 = vld [vmem:[#allocation10 + $0xc8] sm:$0xff]
    %v839 = vld [vmem:[#allocation10 + $0xd0] sm:$0xff]
    %v840 = vld [vmem:[#allocation10 + $0xd8] sm:$0xff]
    %v841 = vld [vmem:[#allocation10 + $0xe0] sm:$0xff]
    %v842 = vld [vmem:[#allocation10 + $0xe8] sm:$0xff]
    %v843 = vld [vmem:[#allocation10 + $0xf0] sm:$0xff]
    %v844 = vld [vmem:[#allocation10 + $0xf8] sm:$0xff]
    %v845 = vld [vmem:[#allocation10 + $0x100] sm:$0xff]
    %v846 = vld [vmem:[#allocation10 + $0x108] sm:$0xff]
    %v847 = vld [vmem:[#allocation10 + $0x110] sm:$0xff]
    %v848 = vld [vmem:[#allocation10 + $0x118] sm:$0xff]
    %v849 = vld [vmem:[#allocation10 + $0x120] sm:$0xff]
    %v850 = vld [vmem:[#allocation10 + $0x128] sm:$0xff]
    %v851 = vld [vmem:[#allocation10 + $0x130] sm:$0xff]
    %v852 = vld [vmem:[#allocation10 + $0x138] sm:$0xff]
    %v853 = vld [vmem:[#allocation10 + $0x140] sm:$0xff]
    %v854 = vld [vmem:[#allocation10 + $0x148] sm:$0xff]
    %v855 = vld [vmem:[#allocation10 + $0x150] sm:$0xff]
    %v856 = vld [vmem:[#allocation10 + $0x158] sm:$0xff]
    %v857 = vld [vmem:[#allocation10 + $0x160] sm:$0xff]
    %v858 = vld [vmem:[#allocation10 + $0x168] sm:$0xff]
    %v859 = vld [vmem:[#allocation10 + $0x170] sm:$0xff]
    %v860 = vld [vmem:[#allocation10 + $0x178] sm:$0xff]
    %v861 = vld [vmem:[%s6] sm:$0x1]
    %v863 = vlaneseq
    %v864 = vshrl.u32 %v863, 7
    %v865 = vsub.s32 0, %v864
    %v866 = vrot.slane %v861, %v865
    %868 = vmatprep.subr.mxu0 0.0
    %869 = vmatpush1.msra.mxu0 %v828
    %870 = vmatprep.subr.mxu0 0.0
    %871 = vmatpush1.msra.mxu0 %v827
    %872 = vmatprep.subr.mxu0 0.0
    %873 = vmatpush1.msra.mxu0 %v826
    %874 = vmatprep.subr.mxu0 0.0
    %875 = vmatpush1.msra.mxu0 %v825
    %876 = vmatprep.subr.mxu0 0.0
    %877 = vmatpush1.msra.mxu0 %v824
    %878 = vmatprep.subr.mxu0 0.0
    %879 = vmatpush1.msra.mxu0 %v823
    %880 = vmatprep.subr.mxu0 0.0
    %881 = vmatpush1.msra.mxu0 %v822
    %882 = vmatprep.subr.mxu0 0.0
    %883 = vmatpush1.msra.mxu0 %v821
    %884 = vmatprep.subr.mxu0 0.0
    %885 = vmatpush1.msra.mxu0 %v820
    %886 = vmatprep.subr.mxu0 0.0
    %887 = vmatpush1.msra.mxu0 %v819
    %888 = vmatprep.subr.mxu0 0.0
    %889 = vmatpush1.msra.mxu0 %v818
    %890 = vmatprep.subr.mxu0 0.0
    %891 = vmatpush1.msra.mxu0 %v817
    %892 = vmatprep.subr.mxu0 0.0
    %893 = vmatpush1.msra.mxu0 %v816
    %894 = vmatprep.subr.mxu0 0.0
    %895 = vmatpush1.msra.mxu0 %v815
    %896 = vmatprep.subr.mxu0 0.0
    %897 = vmatpush1.msra.mxu0 %v814
    %898 = vmatprep.subr.mxu0 0.0
    %899 = vmatpush1.msra.mxu0 %v813
    %900 = vmatprep.subr.mxu0 0.0
    %901 = vmatpush2.msra.mxu0 %v844
    %902 = vmatprep.subr.mxu0 0.0
    %903 = vmatpush2.msra.mxu0 %v843
    %904 = vmatprep.subr.mxu0 0.0
    %905 = vmatpush2.msra.mxu0 %v842
    %906 = vmatprep.subr.mxu0 0.0
    %907 = vmatpush2.msra.mxu0 %v841
    %908 = vmatprep.subr.mxu0 0.0
    %909 = vmatpush2.msra.mxu0 %v840
    %910 = vmatprep.subr.mxu0 0.0
    %911 = vmatpush2.msra.mxu0 %v839
    %912 = vmatprep.subr.mxu0 0.0
    %913 = vmatpush2.msra.mxu0 %v838
    %914 = vmatprep.subr.mxu0 0.0
    %915 = vmatpush2.msra.mxu0 %v837
    %916 = vmatprep.subr.mxu0 0.0
    %917 = vmatpush2.msra.mxu0 %v836
    %918 = vmatprep.subr.mxu0 0.0
    %919 = vmatpush2.msra.mxu0 %v835
    %920 = vmatprep.subr.mxu0 0.0
    %921 = vmatpush2.msra.mxu0 %v834
    %922 = vmatprep.subr.mxu0 0.0
    %923 = vmatpush2.msra.mxu0 %v833
    %924 = vmatprep.subr.mxu0 0.0
    %925 = vmatpush2.msra.mxu0 %v832
    %926 = vmatprep.subr.mxu0 0.0
    %927 = vmatpush2.msra.mxu0 %v831
    %928 = vmatprep.subr.mxu0 0.0
    %929 = vmatpush2.msra.mxu0 %v830
    %930 = vmatprep.subr.mxu0 0.0
    %931 = vmatpush2.msra.mxu0 %v829
    %932 = vmatprep.mubr.f32.mxu0 %v808
    %933 = vmatmul.mubr.f32.gmra.mxu0 %v807
    %v934 = vpop.f32.mrf.mxu0
    %v935 = vadd.f32 %v866, %v934
    %v936 = vpop.f32.mrf.mxu0
    %937 = vmatprep.mubr.f32.mxu0 %v811
    %938 = vmatmul.mubr.f32.gmra.mxu0 %v810
    %v939 = vpop.f32.mrf.mxu0
    %v940 = vadd.f32 %v866, %v939
    %v941 = vpop.f32.mrf.mxu0
    %942 = vdwg.mxu0
    %943 = vmatprep.subr.mxu0 0.0
    %944 = vmatpush1.msra.mxu0 %v860
    %945 = vmatprep.subr.mxu0 0.0
    %946 = vmatpush1.msra.mxu0 %v859
    %947 = vmatprep.subr.mxu0 0.0
    %948 = vmatpush1.msra.mxu0 %v858
    %949 = vmatprep.subr.mxu0 0.0
    %950 = vmatpush1.msra.mxu0 %v857
    %951 = vmatprep.subr.mxu0 0.0
    %952 = vmatpush1.msra.mxu0 %v856
    %953 = vmatprep.subr.mxu0 0.0
    %954 = vmatpush1.msra.mxu0 %v855
    %955 = vmatprep.subr.mxu0 0.0
    %956 = vmatpush1.msra.mxu0 %v854
    %957 = vmatprep.subr.mxu0 0.0
    %958 = vmatpush1.msra.mxu0 %v853
    %959 = vmatprep.subr.mxu0 0.0
    %960 = vmatpush1.msra.mxu0 %v852
    %961 = vmatprep.subr.mxu0 0.0
    %962 = vmatpush1.msra.mxu0 %v851
    %963 = vmatprep.subr.mxu0 0.0
    %964 = vmatpush1.msra.mxu0 %v850
    %965 = vmatprep.subr.mxu0 0.0
    %966 = vmatpush1.msra.mxu0 %v849
    %967 = vmatprep.subr.mxu0 0.0
    %968 = vmatpush1.msra.mxu0 %v848
    %969 = vmatprep.subr.mxu0 0.0
    %970 = vmatpush1.msra.mxu0 %v847
    %971 = vmatprep.subr.mxu0 0.0
    %972 = vmatpush1.msra.mxu0 %v846
    %973 = vmatprep.subr.mxu0 0.0
    %974 = vmatpush1.msra.mxu0 %v845
    %975 = vmatprep.subr.mxu0 0.0
    %976 = vmatpush2.msra.mxu0 0.0
    %977 = vmatprep.subr.mxu0 0.0
    %978 = vmatpush2.msra.mxu0 0.0
    %979 = vmatprep.subr.mxu0 0.0
    %980 = vmatpush2.msra.mxu0 0.0
    %981 = vmatprep.subr.mxu0 0.0
    %982 = vmatpush2.msra.mxu0 0.0
    %983 = vmatprep.subr.mxu0 0.0
    %984 = vmatpush2.msra.mxu0 0.0
    %985 = vmatprep.subr.mxu0 0.0
    %986 = vmatpush2.msra.mxu0 0.0
    %987 = vmatprep.subr.mxu0 0.0
    %988 = vmatpush2.msra.mxu0 0.0
    %989 = vmatprep.subr.mxu0 0.0
    %990 = vmatpush2.msra.mxu0 0.0
    %991 = vmatprep.subr.mxu0 0.0
    %992 = vmatpush2.msra.mxu0 0.0
    %993 = vmatprep.subr.mxu0 0.0
    %994 = vmatpush2.msra.mxu0 0.0
    %995 = vmatprep.subr.mxu0 0.0
    %996 = vmatpush2.msra.mxu0 0.0
    %997 = vmatprep.subr.mxu0 0.0
    %998 = vmatpush2.msra.mxu0 0.0
    %999 = vmatprep.subr.mxu0 0.0
    %1000 = vmatpush2.msra.mxu0 0.0
    %1001 = vmatprep.subr.mxu0 0.0
    %1002 = vmatpush2.msra.mxu0 0.0
    %1003 = vmatprep.subr.mxu0 0.0
    %1004 = vmatpush2.msra.mxu0 0.0
    %1005 = vmatprep.subr.mxu0 0.0
    %1006 = vmatpush2.msra.mxu0 0.0
    %1007 = vmatprep.mubr.f32.mxu0 0.0
    %1008 = vmatmul.mubr.f32.gmra.mxu0 %v809
    %v1009 = vpop.f32.mrf.mxu0
    %v1010 = vadd.f32 %v935, %v1009
    %v1011 = vpop.f32.mrf.mxu0
    %1012 = vmatprep.mubr.f32.mxu0 0.0
    %1013 = vmatmul.mubr.f32.gmra.mxu0 %v812
    %v1014 = vpop.f32.mrf.mxu0
    %v1015 = vadd.f32 %v940, %v1014
    %v1016 = vpop.f32.mrf.mxu0
    %1017 = vdwg.mxu0
    %v1018 = vtanh.pop %v1010
    %v1019 = vtanh.pop %v1015
    %v1020 = vmul.f32 %v1018, 2.0
    %v1021 = vmul.f32 %v1019, 2.0
    %1022 = vst [vmem:[#allocation11] sm:$0xff] %v1020
    %1023 = vst [vmem:[#allocation11 + $0x8] sm:$0xff] %v1021
    // Predicated region
    $region50: #{tpu_custom_call.1} parent=1 // pred_check
      _
    $region51: #{tpu_custom_call.1} parent=1 // pred_check_branch
      %1025 = sbr.rel (0) target = $region53
    $region52: #{tpu_custom_call.1} parent=1 // pred_region
      %s1027 = ssub.s32 256, 32
      %1028 = vsyncadd [#allocation4], %s1027
      %s1029 = sshll.u32 [#allocation11], 4
      %s1030 = int_to_ptr.vmem [resolvable:$true] %s1029
      %1035 = dma.vmem_to_hbm [thread:$0]  %s1030, 32, %s7, [#allocation4], 32, 32, 2
    $region53: #{tpu_custom_call.1} parent=1 // pred_fallthru
      _
    // Predicated region
    $region54: #{tpu_custom_call.1} parent=1 // pred_check
      _
    $region55: #{tpu_custom_call.1} parent=1 // pred_check_branch
      %1037 = sbr.rel (0) target = $region57
    $region56: #{tpu_custom_call.1} parent=1 // pred_region
      %1038 = dma.done [#allocation4], 256
    $region57: #{tpu_custom_call.1} parent=1 // pred_fallthru
      _
    %1039 = vsyncpa [#allocation3], 1
    %1040 = vsyncpa [#allocation6], 1
    %1041 = vsyncpa [#allocation9], 1
    %1042 = vsyncpa [#allocation4], 1

</llo_original>
